<compile_context>
chip_gen: v6e
topology: v6e:2x2x1
jax: 0.10.0
libtpu: 0.0.40
codegen_flags: <defaults>
</compile_context>

<pallas_src>
import functools

import jax
import jax.numpy as jnp
from jax import lax
from jax.experimental import pallas as pl
from jax.experimental.pallas import tpu as pltpu


def _round_up(x, m):
    return ((x + m - 1) // m) * m


def _cdiv(a, b):
    return -(-a // b)


def _mlp_kernel(t_ref, w1_ref, b1_ref, w2_ref, b2_ref, o_ref, *, chunk, n_chunks):
    # t_ref : [1, TB]   raw time steps (batch on the lane axis; .float() in-kernel)
    # w1_ref: [H, 1]    b1_ref: [H, 1]     (first Linear, torch [out, in] layout)
    # w2_ref: [T, H]    b2_ref: [T, 1]     (second Linear, torch layout)
    # o_ref : [TB, T]   module's [batch, temb_dim] layout (transpose fused here)
    w1 = w1_ref[...]          # resident weights (constant index_map): loaded once
    b1 = b1_ref[...]
    w2 = w2_ref[...]
    b2 = b2_ref[...]

    def body(c, carry):
        off = pl.multiple_of(c * chunk, 128)
        x = t_ref[:, pl.ds(off, chunk)].astype(jnp.float32)          # [1, chunk]
        # First Linear has in_features == 1: outer product + bias on the VPU.
        h = jnp.maximum(w1 * x + b1, 0.0)                            # [H, chunk] f32
        # Second Linear on the MXU, f32 operands / f32 accumulation.
        y = jnp.dot(w2, h, preferred_element_type=jnp.float32) + b2  # [T, chunk] f32
        # Fused layout fixup: small XLU transpose, then store [chunk, T].
        o_ref[pl.ds(off, chunk), :] = y.T
        return carry

    lax.fori_loop(0, n_chunks, body, None, unroll=True)


@functools.partial(jax.jit, static_argnames=("tb_cap",))
def learned_embeddings_pallas(time_steps, w1, b1, w2, b2, *, tb_cap=4096):
    """time_steps: [B] (any numeric dtype).
    w1: [H, 1], b1: [H], w2: [T, H], b2: [T]  (torch nn.Linear layout).
    Returns [B, T] float32 (== module forward output)."""
    B = time_steps.shape[0]
    H = w1.shape[0]
    T = w2.shape[0]

    # --- batch tiling -------------------------------------------------------
    b128 = _round_up(max(B, 1), 128)
    # At least 2 tiles when the batch allows it (both v7x TensorCores busy);
    # otherwise as few tiles as possible, each at most tb_cap lanes wide.
    n_tiles = max(_cdiv(b128, tb_cap), 2 if b128 >= 256 else 1)
    tb = _round_up(_cdiv(b128, n_tiles), 128)      # 128-multiple tile width
    grid_n = _cdiv(b128, tb)
    b_pad = grid_n * tb                            # padding bounded (~<128/tile)

    # Inner chunk: 256 lanes if it divides tb, else 128 (tb is a 128-multiple).
    chunk = 256 if tb % 256 == 0 else 128
    n_chunks = tb // chunk

    # --- operand prep (cheap, no transposes of parameters) ------------------
    t_row = time_steps.reshape(1, B)
    if b_pad != B:
        t_row = jnp.pad(t_row, ((0, 0), (0, b_pad - B)))

    w1c = w1.astype(jnp.float32).reshape(H, 1)
    b1c = b1.astype(jnp.float32).reshape(H, 1)
    w2c = w2.astype(jnp.float32)
    b2c = b2.astype(jnp.float32).reshape(T, 1)

    kernel = functools.partial(_mlp_kernel, chunk=chunk, n_chunks=n_chunks)

    out = pl.pallas_call(
        kernel,
        out_shape=jax.ShapeDtypeStruct((b_pad, T), jnp.float32),
        grid_spec=pltpu.PrefetchScalarGridSpec(
            num_scalar_prefetch=0,
            grid=(grid_n,),
            in_specs=[
                pl.BlockSpec((1, tb), lambda i: (0, i)),   # time steps, tiled over batch
                pl.BlockSpec((H, 1), lambda i: (0, 0)),    # weights: constant index_map
                pl.BlockSpec((H, 1), lambda i: (0, 0)),    #   -> resident in VMEM
                pl.BlockSpec((T, H), lambda i: (0, 0)),
                pl.BlockSpec((T, 1), lambda i: (0, 0)),
            ],
            # Last block dim T equals the full array dim -> (8,128) rule OK;
            # (tb, T) block is a contiguous slab of the (b_pad, T) HBM array.
            out_specs=pl.BlockSpec((tb, T), lambda i: (i, 0)),
        ),
        compiler_params=pltpu.CompilerParams(
            dimension_semantics=("parallel",),   # batch tiles are independent
        ),
    )(t_row, w1c, b1c, w2c, b2c)

    return out[:B] if b_pad != B else out


def _reference(time_steps, w1, b1, w2, b2):
    x = time_steps.astype(jnp.float32)[:, None]        # [B, 1]
    h = jnp.maximum(x @ w1.T + b1[None, :], 0.0)       # [B, H]
    return h @ w2.T + b2[None, :]                      # [B, T]


def _check(time_steps, w1, b1, w2, b2, T):
    out = jax.block_until_ready(
        learned_embeddings_pallas(time_steps, w1, b1, w2, b2))
    assert out.shape == (time_steps.shape[0], T), out.shape
    ref = _reference(time_steps, w1, b1, w2, b2)
    # f32 MXU path -> error should be ~1e-6; loose-but-meaningful bound below.
    rel = jnp.max(jnp.abs(out - ref)) / (jnp.max(jnp.abs(ref)) + 1e-6)
    assert rel < 1e-2, f"rel err {rel}"


if __name__ == "__main__":
    temb_dim = 16
    hidden_dim = 64          # module default
    batch = 8

    key = jax.random.PRNGKey(0)
    k1, k2, k3, k4, k5, k6, k7 = jax.random.split(key, 7)

    # Parameters in torch nn.Linear layout: weight [out, in], bias [out].
    w1 = jax.random.normal(k1, (hidden_dim, 1), jnp.float32) * 0.5
    b1 = jax.random.normal(k2, (hidden_dim,), jnp.float32) * 0.1
    w2 = jax.random.normal(k3, (temb_dim, hidden_dim), jnp.float32) * 0.2
    b2 = jax.random.normal(k4, (temb_dim,), jnp.float32) * 0.1

    # Diffusion-style integer time steps, shape [B].
    ts = jax.random.randint(k5, (batch,), 0, 1000)
    _check(ts, w1, b1, w2, b2, temb_dim)                 # single tile, single chunk

    ts2 = jax.random.randint(k6, (300,), 0, 1000)
    _check(ts2, w1, b1, w2, b2, temb_dim)                # grid=(2,), ragged batch

    ts3 = jax.random.randint(k7, (1300,), 0, 1000)
    _check(ts3, w1, b1, w2, b2, temb_dim)                # exercises the inner chunk loop

    print("KERNEL_OK")
</pallas_src>

<mosaic_0001>
module attributes {stable_mosaic.version = 11 : i64} {
  func.func @_mlp_kernel(%arg0: i32, %arg1: memref<1x128xi32, #tpu.memory_space<vmem>>, %arg2: memref<64x1xf32, #tpu.memory_space<vmem>>, %arg3: memref<64x1xf32, #tpu.memory_space<vmem>>, %arg4: memref<16x64xf32, #tpu.memory_space<vmem>>, %arg5: memref<16x1xf32, #tpu.memory_space<vmem>>, %arg6: memref<128x16xf32, #tpu.memory_space<vmem>>) attributes {dimension_semantics = [#tpu.dimension_semantics<parallel>], iteration_bounds = array<i64: 1>, scalar_prefetch = 0 : i64, scratch_operands = 0 : i64, tpu.core_type = #tpu.core_type<tc>, window_params = [{transform_indices = @transform_0, window_bounds = array<i64: 1, 128>}, {pipeline_mode = #tpu.pipeline_mode<synchronous>, transform_indices = @transform_1, window_bounds = array<i64: 64, 1>}, {pipeline_mode = #tpu.pipeline_mode<synchronous>, transform_indices = @transform_2, window_bounds = array<i64: 64, 1>}, {pipeline_mode = #tpu.pipeline_mode<synchronous>, transform_indices = @transform_3, window_bounds = array<i64: 16, 64>}, {pipeline_mode = #tpu.pipeline_mode<synchronous>, transform_indices = @transform_4, window_bounds = array<i64: 16, 1>}, {transform_indices = @transform_5, window_bounds = array<i64: 128, 16>}]} {
    %c0 = arith.constant 0 : index
    %c0_0 = arith.constant 0 : index
    %0 = vector.load %arg2[%c0, %c0_0] : memref<64x1xf32, #tpu.memory_space<vmem>>, vector<64x1xf32>
    %c0_1 = arith.constant 0 : index
    %c0_2 = arith.constant 0 : index
    %1 = vector.load %arg3[%c0_1, %c0_2] : memref<64x1xf32, #tpu.memory_space<vmem>>, vector<64x1xf32>
    %c0_3 = arith.constant 0 : index
    %c0_4 = arith.constant 0 : index
    %2 = vector.load %arg4[%c0_3, %c0_4] : memref<16x64xf32, #tpu.memory_space<vmem>>, vector<16x64xf32>
    %c0_5 = arith.constant 0 : index
    %c0_6 = arith.constant 0 : index
    %3 = vector.load %arg5[%c0_5, %c0_6] : memref<16x1xf32, #tpu.memory_space<vmem>>, vector<16x1xf32>
    %c0_i32 = arith.constant 0 : i32
    %c128_i32 = arith.constant 128 : i32
    %4 = arith.muli %c0_i32, %c128_i32 : i32
    %5 = tpu.assume_multiple %4, 128 : i32
    %c0_7 = arith.constant 0 : index
    %6 = arith.index_cast %5 : i32 to index
    %7 = vector.load %arg1[%c0_7, %6] : memref<1x128xi32, #tpu.memory_space<vmem>>, vector<1x128xi32>
    %8 = arith.sitofp %7 : vector<1x128xi32> to vector<1x128xf32>
    %9 = vector.broadcast %0 : vector<64x1xf32> to vector<64x128xf32>
    %10 = vector.broadcast %8 : vector<1x128xf32> to vector<64x128xf32>
    %11 = arith.mulf %9, %10 : vector<64x128xf32>
    %12 = vector.broadcast %1 : vector<64x1xf32> to vector<64x128xf32>
    %13 = arith.addf %11, %12 : vector<64x128xf32>
    %cst = arith.constant 0.000000e+00 : f32
    %14 = vector.broadcast %cst : f32 to vector<64x128xf32>
    %15 = arith.maximumf %13, %14 : vector<64x128xf32>
    %cst_8 = arith.constant dense<0.000000e+00> : vector<16x128xf32>
    %16 = tpu.matmul %2, %15, %cst_8 {dimension_numbers = #tpu.dot_dimension_numbers<[1], [0], [0], [1], [0, 0, 1, 1], [], []>} : vector<16x64xf32>, vector<64x128xf32>, vector<16x128xf32> -> vector<16x128xf32>
    %17 = vector.broadcast %3 : vector<16x1xf32> to vector<16x128xf32>
    %18 = arith.addf %16, %17 : vector<16x128xf32>
    %19 = tpu.transpose %18, [1, 0] : vector<16x128xf32> -> vector<128x16xf32>
    %20 = arith.index_cast %5 : i32 to index
    %c0_9 = arith.constant 0 : index
    %21 = vector.load %arg6[%20, %c0_9] : memref<128x16xf32, #tpu.memory_space<vmem>>, vector<128x16xf32>
    tpu.vector_store %arg6[%20, %c0_9], %19 {strides = array<i32>} : memref<128x16xf32, #tpu.memory_space<vmem>>, vector<128x16xf32>,
    %c1_i32 = arith.constant 1 : i32
    return
  }
  func.func @transform_0(%arg0: i32) -> (i32, i32) {
    %c0_i32 = arith.constant 0 : i32
    %c0_i32_0 = arith.constant 0 : i32
    return %c0_i32, %arg0 : i32, i32
  }
  func.func @transform_1(%arg0: i32) -> (i32, i32) {
    %c0_i32 = arith.constant 0 : i32
    %c0_i32_0 = arith.constant 0 : i32
    %c0_i32_1 = arith.constant 0 : i32
    return %c0_i32, %c0_i32_0 : i32, i32
  }
  func.func @transform_2(%arg0: i32) -> (i32, i32) {
    %c0_i32 = arith.constant 0 : i32
    %c0_i32_0 = arith.constant 0 : i32
    %c0_i32_1 = arith.constant 0 : i32
    return %c0_i32, %c0_i32_0 : i32, i32
  }
  func.func @transform_3(%arg0: i32) -> (i32, i32) {
    %c0_i32 = arith.constant 0 : i32
    %c0_i32_0 = arith.constant 0 : i32
    %c0_i32_1 = arith.constant 0 : i32
    return %c0_i32, %c0_i32_0 : i32, i32
  }
  func.func @transform_4(%arg0: i32) -> (i32, i32) {
    %c0_i32 = arith.constant 0 : i32
    %c0_i32_0 = arith.constant 0 : i32
    %c0_i32_1 = arith.constant 0 : i32
    return %c0_i32, %c0_i32_0 : i32, i32
  }
  func.func @transform_5(%arg0: i32) -> (i32, i32) {
    %c0_i32 = arith.constant 0 : i32
    %c0_i32_0 = arith.constant 0 : i32
    return %arg0, %c0_i32 : i32, i32
  }
}

</mosaic_0001>

<llo_original>
// kernel: learned_embeddings_pallas.1
$region0: #{learned_embeddings_pallas.1}
  #allocation0 [shape = 'u32[]', space=smem, size = 0x4, offset = 0x4, fixed_abs, tag = 'smem constant byte address 0x4 - core index']
  #allocation1 [shape = 'u32[144,128]{1,0:T(1,128)}', space=vmem, size = 0x12000, scoped, tag = 'internal scratch']
  %s0 = inlined_call_operand.vmem [shape: s32[1,128], index: 0, kind: input, shape index: {}]
  %s1 = inlined_call_operand.vmem [shape: f32[64,1], index: 1, kind: input, shape index: {}]
  %s2 = inlined_call_operand.vmem [shape: f32[64,1], index: 2, kind: input, shape index: {}]
  %s3 = inlined_call_operand.vmem [shape: f32[16,64], index: 3, kind: input, shape index: {}]
  %s4 = inlined_call_operand.vmem [shape: f32[16,1], index: 4, kind: input, shape index: {}]
  %s5 = inlined_call_operand.vmem [shape: f32[128,16], index: 5, kind: output, shape index: {}]
  %s6 = sld [smem:[#allocation0]]
  $region30: #{learned_embeddings_pallas.1} parent=0
    _
  %s8 = ssub.s32 1, %s6
  %s9 = scalar_select 0, %s8, %s6
  // Predicated region
  $region2: #{learned_embeddings_pallas.1} parent=0 // pred_check
    _
  $region3: #{learned_embeddings_pallas.1} parent=0 // pred_check_branch
    %11 = sbr.rel (0) target = $region5
  $region4: #{learned_embeddings_pallas.1} parent=0 // pred_region
    _
  $region5: #{learned_embeddings_pallas.1} parent=0 // pred_fallthru
    _
  // Predicated region
  $region6: #{learned_embeddings_pallas.1} parent=0 // pred_check
    _
  $region7: #{learned_embeddings_pallas.1} parent=0 // pred_check_branch
    %13 = sbr.rel (0) target = $region9
  $region8: #{learned_embeddings_pallas.1} parent=0 // pred_region
    _
  $region9: #{learned_embeddings_pallas.1} parent=0 // pred_fallthru
    _
  // Predicated region
  $region10: #{learned_embeddings_pallas.1} parent=0 // pred_check
    _
  $region11: #{learned_embeddings_pallas.1} parent=0 // pred_check_branch
    %15 = sbr.rel (0) target = $region13
  $region12: #{learned_embeddings_pallas.1} parent=0 // pred_region
    _
  $region13: #{learned_embeddings_pallas.1} parent=0 // pred_fallthru
    _
  // Predicated region
  $region14: #{learned_embeddings_pallas.1} parent=0 // pred_check
    _
  $region15: #{learned_embeddings_pallas.1} parent=0 // pred_check_branch
    %17 = sbr.rel (0) target = $region17
  $region16: #{learned_embeddings_pallas.1} parent=0 // pred_region
    _
  $region17: #{learned_embeddings_pallas.1} parent=0 // pred_fallthru
    _
  // Predicated region
  $region18: #{learned_embeddings_pallas.1} parent=0 // pred_check
    _
  $region19: #{learned_embeddings_pallas.1} parent=0 // pred_check_branch
    %19 = sbr.rel (0) target = $region21
  $region20: #{learned_embeddings_pallas.1} parent=0 // pred_region
    _
  $region21: #{learned_embeddings_pallas.1} parent=0 // pred_fallthru
    _
  %v20 = vld [vmem:[%s1] sm:$0xff]
  %v21 = vld [vmem:[%s1 + $0x8] sm:$0xff]
  %v22 = vld [vmem:[%s1 + $0x10] sm:$0xff]
  %v23 = vld [vmem:[%s1 + $0x18] sm:$0xff]
  %v24 = vld [vmem:[%s1 + $0x20] sm:$0xff]
  %v25 = vld [vmem:[%s1 + $0x28] sm:$0xff]
  %v26 = vld [vmem:[%s1 + $0x30] sm:$0xff]
  %v27 = vld [vmem:[%s1 + $0x38] sm:$0xff]
  %v28 = vld [vmem:[%s2] sm:$0xff]
  %v29 = vld [vmem:[%s2 + $0x8] sm:$0xff]
  %v30 = vld [vmem:[%s2 + $0x10] sm:$0xff]
  %v31 = vld [vmem:[%s2 + $0x18] sm:$0xff]
  %v32 = vld [vmem:[%s2 + $0x20] sm:$0xff]
  %v33 = vld [vmem:[%s2 + $0x28] sm:$0xff]
  %v34 = vld [vmem:[%s2 + $0x30] sm:$0xff]
  %v35 = vld [vmem:[%s2 + $0x38] sm:$0xff]
  %v36 = vld [vmem:[%s3] sm:$0xff]
  %v37 = vld [vmem:[%s3 + $0x8] sm:$0xff]
  %v38 = vld [vmem:[%s4] sm:$0xff]
  %v39 = vld [vmem:[%s4 + $0x8] sm:$0xff]
  %v40 = vld [vmem:[%s0] sm:$0x1]
  %v41 = vcvt.s32.f32 %v40
  %43 = vset.pattern.permute.xlu0 0
  %44 = vperm.xlu0 %43, %v20
  %v45 = vpop.permute.xlu0 %44
  %48 = vset.pattern.permute.xlu0 0
  %49 = vperm.xlu0 %48, %v21
  %v50 = vpop.permute.xlu0 %49
  %53 = vset.pattern.permute.xlu0 0
  %54 = vperm.xlu0 %53, %v22
  %v55 = vpop.permute.xlu0 %54
  %58 = vset.pattern.permute.xlu0 0
  %59 = vperm.xlu0 %58, %v23
  %v60 = vpop.permute.xlu0 %59
  %63 = vset.pattern.permute.xlu0 0
  %64 = vperm.xlu0 %63, %v24
  %v65 = vpop.permute.xlu0 %64
  %68 = vset.pattern.permute.xlu0 0
  %69 = vperm.xlu0 %68, %v25
  %v70 = vpop.permute.xlu0 %69
  %73 = vset.pattern.permute.xlu0 0
  %74 = vperm.xlu0 %73, %v26
  %v75 = vpop.permute.xlu0 %74
  %78 = vset.pattern.permute.xlu0 0
  %79 = vperm.xlu0 %78, %v27
  %v80 = vpop.permute.xlu0 %79
  %v83 = vlaneseq
  %v84 = vshrl.u32 %v83, 7
  %v85 = vsub.s32 0, %v84
  %v86 = vrot.slane %v41, %v85
  %v88 = vmul.f32 %v45, %v86
  %v89 = vmul.f32 %v50, %v86
  %v90 = vmul.f32 %v55, %v86
  %v91 = vmul.f32 %v60, %v86
  %v92 = vmul.f32 %v65, %v86
  %v93 = vmul.f32 %v70, %v86
  %v94 = vmul.f32 %v75, %v86
  %v95 = vmul.f32 %v80, %v86
  %97 = vset.pattern.permute.xlu0 0
  %98 = vperm.xlu0 %97, %v28
  %v99 = vpop.permute.xlu0 %98
  %102 = vset.pattern.permute.xlu0 0
  %103 = vperm.xlu0 %102, %v29
  %v104 = vpop.permute.xlu0 %103
  %107 = vset.pattern.permute.xlu0 0
  %108 = vperm.xlu0 %107, %v30
  %v109 = vpop.permute.xlu0 %108
  %112 = vset.pattern.permute.xlu0 0
  %113 = vperm.xlu0 %112, %v31
  %v114 = vpop.permute.xlu0 %113
  %117 = vset.pattern.permute.xlu0 0
  %118 = vperm.xlu0 %117, %v32
  %v119 = vpop.permute.xlu0 %118
  %122 = vset.pattern.permute.xlu0 0
  %123 = vperm.xlu0 %122, %v33
  %v124 = vpop.permute.xlu0 %123
  %127 = vset.pattern.permute.xlu0 0
  %128 = vperm.xlu0 %127, %v34
  %v129 = vpop.permute.xlu0 %128
  %132 = vset.pattern.permute.xlu0 0
  %133 = vperm.xlu0 %132, %v35
  %v134 = vpop.permute.xlu0 %133
  %v136 = vadd.f32 %v88, %v99
  %v137 = vadd.f32 %v89, %v104
  %v138 = vadd.f32 %v90, %v109
  %v139 = vadd.f32 %v91, %v114
  %v140 = vadd.f32 %v92, %v119
  %v141 = vadd.f32 %v93, %v124
  %v142 = vadd.f32 %v94, %v129
  %v143 = vadd.f32 %v95, %v134
  %v144 = vmax.f32 %v136, 0.0
  %v145 = vmax.f32 %v137, 0.0
  %v146 = vmax.f32 %v138, 0.0
  %v147 = vmax.f32 %v139, 0.0
  %v148 = vmax.f32 %v140, 0.0
  %v149 = vmax.f32 %v141, 0.0
  %v150 = vmax.f32 %v142, 0.0
  %v151 = vmax.f32 %v143, 0.0
  %153 = vset.pattern.permute.xlu0 0
  %154 = vperm.xlu0 %153, %v38
  %v155 = vpop.permute.xlu0 %154
  %158 = vset.pattern.permute.xlu0 0
  %159 = vperm.xlu0 %158, %v39
  %v160 = vpop.permute.xlu0 %159
  %vm162 = vcmask 523264
  %v164 = vsel %vm162, %v36, 0
  %v167 = vsel %vm162, %v37, 0
  %169 = vmatprep.subr.mxu0 0.0
  %170 = vmatpush1.msra.mxu0 0.0
  %171 = vmatprep.subr.mxu0 0.0
  %172 = vmatpush1.msra.mxu0 0.0
  %173 = vmatprep.subr.mxu0 0.0
  %174 = vmatpush1.msra.mxu0 0.0
  %175 = vmatprep.subr.mxu0 0.0
  %176 = vmatpush1.msra.mxu0 0.0
  %177 = vmatprep.subr.mxu0 0.0
  %178 = vmatpush1.msra.mxu0 0.0
  %179 = vmatprep.subr.mxu0 0.0
  %180 = vmatpush1.msra.mxu0 0.0
  %181 = vmatprep.subr.mxu0 0.0
  %182 = vmatpush1.msra.mxu0 0.0
  %183 = vmatprep.subr.mxu0 0.0
  %184 = vmatpush1.msra.mxu0 0.0
  %185 = vmatprep.subr.mxu0 0.0
  %186 = vmatpush1.msra.mxu0 %v151
  %187 = vmatprep.subr.mxu0 0.0
  %188 = vmatpush1.msra.mxu0 %v150
  %189 = vmatprep.subr.mxu0 0.0
  %190 = vmatpush1.msra.mxu0 %v149
  %191 = vmatprep.subr.mxu0 0.0
  %192 = vmatpush1.msra.mxu0 %v148
  %193 = vmatprep.subr.mxu0 0.0
  %194 = vmatpush1.msra.mxu0 %v147
  %195 = vmatprep.subr.mxu0 0.0
  %196 = vmatpush1.msra.mxu0 %v146
  %197 = vmatprep.subr.mxu0 0.0
  %198 = vmatpush1.msra.mxu0 %v145
  %199 = vmatprep.subr.mxu0 0.0
  %200 = vmatpush1.msra.mxu0 %v144
  %201 = vmatprep.subr.mxu0 0.0
  %202 = vmatpush2.msra.mxu0 0.0
  %203 = vmatprep.subr.mxu0 0.0
  %204 = vmatpush2.msra.mxu0 0.0
  %205 = vmatprep.subr.mxu0 0.0
  %206 = vmatpush2.msra.mxu0 0.0
  %207 = vmatprep.subr.mxu0 0.0
  %208 = vmatpush2.msra.mxu0 0.0
  %209 = vmatprep.subr.mxu0 0.0
  %210 = vmatpush2.msra.mxu0 0.0
  %211 = vmatprep.subr.mxu0 0.0
  %212 = vmatpush2.msra.mxu0 0.0
  %213 = vmatprep.subr.mxu0 0.0
  %214 = vmatpush2.msra.mxu0 0.0
  %215 = vmatprep.subr.mxu0 0.0
  %216 = vmatpush2.msra.mxu0 0.0
  %217 = vmatprep.subr.mxu0 0.0
  %218 = vmatpush2.msra.mxu0 0.0
  %219 = vmatprep.subr.mxu0 0.0
  %220 = vmatpush2.msra.mxu0 0.0
  %221 = vmatprep.subr.mxu0 0.0
  %222 = vmatpush2.msra.mxu0 0.0
  %223 = vmatprep.subr.mxu0 0.0
  %224 = vmatpush2.msra.mxu0 0.0
  %225 = vmatprep.subr.mxu0 0.0
  %226 = vmatpush2.msra.mxu0 0.0
  %227 = vmatprep.subr.mxu0 0.0
  %228 = vmatpush2.msra.mxu0 0.0
  %229 = vmatprep.subr.mxu0 0.0
  %230 = vmatpush2.msra.mxu0 0.0
  %231 = vmatprep.subr.mxu0 0.0
  %232 = vmatpush2.msra.mxu0 0.0
  %233 = vmatprep.mubr.f32.mxu0 0.0
  %234 = vmatmul.mubr.f32.gmra.mxu0 %v164
  %v235 = vpop.f32.mrf.mxu0
  %v236 = vadd.f32 %v155, %v235
  %v237 = vpop.f32.mrf.mxu0
  %238 = vmatprep.mubr.f32.mxu0 0.0
  %239 = vmatmul.mubr.f32.gmra.mxu0 %v167
  %v240 = vpop.f32.mrf.mxu0
  %v241 = vadd.f32 %v160, %v240
  %v242 = vpop.f32.mrf.mxu0
  %243 = vdwg.mxu0
  %244 = vxpose.xlu0.b32.start [1/16] %v236, 128
  %245 = vxpose.xlu0.b32.cont [2/16] %v241, 128
  %246 = vxpose.xlu0.b32.cont [3/16] 0.0, 128
  %247 = vxpose.xlu0.b32.cont [4/16] 0.0, 128
  %248 = vxpose.xlu0.b32.cont [5/16] 0.0, 128
  %249 = vxpose.xlu0.b32.cont [6/16] 0.0, 128
  %250 = vxpose.xlu0.b32.cont [7/16] 0.0, 128
  %251 = vxpose.xlu0.b32.cont [8/16] 0.0, 128
  %252 = vxpose.xlu0.b32.cont [9/16] 0.0, 128
  %253 = vxpose.xlu0.b32.cont [10/16] 0.0, 128
  %254 = vxpose.xlu0.b32.cont [11/16] 0.0, 128
  %255 = vxpose.xlu0.b32.cont [12/16] 0.0, 128
  %256 = vxpose.xlu0.b32.cont [13/16] 0.0, 128
  %257 = vxpose.xlu0.b32.cont [14/16] 0.0, 128
  %258 = vxpose.xlu0.b32.cont [15/16] 0.0, 128
  %259 = vxpose.xlu0.b32.end [16/16] 0.0, 128
  %v260 = vpop.trf.xlu0
  %v261 = vpop.trf.xlu0
  %v262 = vpop.trf.xlu0
  %v263 = vpop.trf.xlu0
  %v264 = vpop.trf.xlu0
  %v265 = vpop.trf.xlu0
  %v266 = vpop.trf.xlu0
  %v267 = vpop.trf.xlu0
  %v268 = vpop.trf.xlu0
  %v269 = vpop.trf.xlu0
  %v270 = vpop.trf.xlu0
  %v271 = vpop.trf.xlu0
  %v272 = vpop.trf.xlu0
  %v273 = vpop.trf.xlu0
  %v274 = vpop.trf.xlu0
  %v275 = vpop.trf.xlu0
  %vm276 = vcmask 130048
  %277 = vst.msk [vmem:[%s5] sm:$0xff] %vm276, %v260
  %278 = vst.msk [vmem:[%s5 + $0x8] sm:$0xff] %vm276, %v261
  %279 = vst.msk [vmem:[%s5 + $0x10] sm:$0xff] %vm276, %v262
  %280 = vst.msk [vmem:[%s5 + $0x18] sm:$0xff] %vm276, %v263
  %281 = vst.msk [vmem:[%s5 + $0x20] sm:$0xff] %vm276, %v264
  %282 = vst.msk [vmem:[%s5 + $0x28] sm:$0xff] %vm276, %v265
  %283 = vst.msk [vmem:[%s5 + $0x30] sm:$0xff] %vm276, %v266
  %284 = vst.msk [vmem:[%s5 + $0x38] sm:$0xff] %vm276, %v267
  %285 = vst.msk [vmem:[%s5 + $0x40] sm:$0xff] %vm276, %v268
  %286 = vst.msk [vmem:[%s5 + $0x48] sm:$0xff] %vm276, %v269
  %287 = vst.msk [vmem:[%s5 + $0x50] sm:$0xff] %vm276, %v270
  %288 = vst.msk [vmem:[%s5 + $0x58] sm:$0xff] %vm276, %v271
  %289 = vst.msk [vmem:[%s5 + $0x60] sm:$0xff] %vm276, %v272
  %290 = vst.msk [vmem:[%s5 + $0x68] sm:$0xff] %vm276, %v273
  %291 = vst.msk [vmem:[%s5 + $0x70] sm:$0xff] %vm276, %v274
  %292 = vst.msk [vmem:[%s5 + $0x78] sm:$0xff] %vm276, %v275
  // Predicated region
  $region22: #{learned_embeddings_pallas.1} parent=0 // pred_check
    _
  $region23: #{learned_embeddings_pallas.1} parent=0 // pred_check_branch
    %294 = sbr.rel (0) target = $region25
  $region24: #{learned_embeddings_pallas.1} parent=0 // pred_region
    _
  $region25: #{learned_embeddings_pallas.1} parent=0 // pred_fallthru
    _
  // Predicated region
  $region26: #{learned_embeddings_pallas.1} parent=0 // pred_check
    _
  $region27: #{learned_embeddings_pallas.1} parent=0 // pred_check_branch
    %296 = sbr.rel (0) target = $region29
  $region28: #{learned_embeddings_pallas.1} parent=0 // pred_region
    _
  $region29: #{learned_embeddings_pallas.1} parent=0 // pred_fallthru
    _

</llo_original>
